<compile_context>
chip_gen: v7x
topology: tpu7x:2x2x1
jax: 0.10.0
libtpu: 0.0.40
codegen_flags: <defaults>
</compile_context>

<pallas_src>
import functools
import math

import jax
import jax.numpy as jnp
from jax.experimental import pallas as pl
from jax.experimental.pallas import tpu as pltpu


_VMEM_LIMIT = 48 * 1024 * 1024  # fits v7x's 64 MiB physical VMEM with headroom


def _round_up(x, m):
    return (x + m - 1) // m * m


# ---------------------------------------------------------------------------
# Tile-size heuristics (static Python on shapes)
# ---------------------------------------------------------------------------
def _pick_tm(M, K):
    if M <= 256:
        return _round_up(M, 16)
    # full-M block if the bf16 A tile stays small enough
    if M <= 1024 and M * K * 2 <= (8 << 20):
        return _round_up(M, 16)
    for t in (512, 256, 128):
        if ((-M) % t) * 8 <= M:          # <= 12.5% padding waste
            return t
    return 256


def _pick_tn(M, N):
    if N <= 512:
        return N                          # single lane block over all of N
    return 512 if M <= 128 else 256


def _pick_tk(K):
    if K <= 10240:
        return K, K                       # full reduction dim, no k grid axis
    # otherwise (FC1: K = S*S*1024) find a multiple-of-128 divisor <= 4096
    for t in range(4096, 127, -128):
        if K % t == 0:
            return t, K
    tk = 2048
    return tk, _round_up(K, tk)


# ---------------------------------------------------------------------------
# Pallas matmul kernels:  O = A @ B + bias   (optionally sigmoid(O))
# ---------------------------------------------------------------------------
def _matmul_bias_kernel_1k(a_ref, b_ref, bias_ref, o_ref, *, apply_sigmoid):
    res = jnp.dot(a_ref[...], b_ref[...], preferred_element_type=jnp.float32)
    res = res + bias_ref[...]
    if apply_sigmoid:
        res = jax.nn.sigmoid(res)
    o_ref[...] = res.astype(o_ref.dtype)


def _matmul_bias_kernel_acc(a_ref, b_ref, bias_ref, o_ref, acc_ref, *, apply_sigmoid):
    k = pl.program_id(2)

    @pl.when(k == 0)
    def _():
        acc_ref[...] = jnp.zeros_like(acc_ref)

    acc_ref[...] += jnp.dot(a_ref[...], b_ref[...],
                            preferred_element_type=jnp.float32)

    @pl.when(k == pl.num_programs(2) - 1)
    def _():
        res = acc_ref[...] + bias_ref[...]
        if apply_sigmoid:
            res = jax.nn.sigmoid(res)
        o_ref[...] = res.astype(o_ref.dtype)


@functools.partial(jax.jit, static_argnames=("apply_sigmoid", "out_dtype"))
def matmul_bias(a, b, bias, *, apply_sigmoid=False, out_dtype=jnp.float32):
    """a: (M, K), b: (K, N), bias: (N,)  ->  (M, N) in out_dtype.

    Operands are cast to bf16 (MXU inputs); accumulation and bias add are f32.
    """
    M, K = a.shape
    K2, N = b.shape
    assert K == K2
    a = a.astype(jnp.bfloat16)
    b = b.astype(jnp.bfloat16)
    bias = bias.astype(jnp.float32).reshape(1, N)

    tm = _pick_tm(M, K)
    Mp = _round_up(M, tm)
    tn = _pick_tn(M, N)
    Np = _round_up(N, tn)
    tk, Kp = _pick_tk(K)
    nk = Kp // tk

    if Mp != M or Kp != K:
        a = jnp.pad(a, ((0, Mp - M), (0, Kp - K)))
    if Kp != K or Np != N:
        b = jnp.pad(b, ((0, Kp - K), (0, Np - N)))
    if Np != N:
        bias = jnp.pad(bias, ((0, 0), (0, Np - N)))

    out_isz = jnp.dtype(out_dtype).itemsize
    cost = pl.CostEstimate(
        flops=2 * Mp * Kp * Np,
        transcendentals=Mp * Np if apply_sigmoid else 0,
        bytes_accessed=(Mp * Kp + Kp * Np) * 2 + Mp * Np * out_isz + Np * 4)

    if nk == 1:
        kernel = functools.partial(_matmul_bias_kernel_1k,
                                   apply_sigmoid=apply_sigmoid)
        out = pl.pallas_call(
            kernel,
            out_shape=jax.ShapeDtypeStruct((Mp, Np), out_dtype),
            grid=(Mp // tm, Np // tn),
            in_specs=[
                pl.BlockSpec((tm, Kp), lambda i, j: (i, 0)),
                pl.BlockSpec((Kp, tn), lambda i, j: (0, j)),
                pl.BlockSpec((1, tn), lambda i, j: (0, j)),
            ],
            out_specs=pl.BlockSpec((tm, tn), lambda i, j: (i, j)),
            compiler_params=pltpu.CompilerParams(
                dimension_semantics=("parallel", "parallel"),
                vmem_limit_bytes=_VMEM_LIMIT),
            cost_estimate=cost,
        )(a, b, bias)
    else:
        kernel = functools.partial(_matmul_bias_kernel_acc,
                                   apply_sigmoid=apply_sigmoid)
        out = pl.pallas_call(
            kernel,
            out_shape=jax.ShapeDtypeStruct((Mp, Np), out_dtype),
            grid=(Mp // tm, Np // tn, nk),
            in_specs=[
                pl.BlockSpec((tm, tk), lambda i, j, k: (i, k)),
                pl.BlockSpec((tk, tn), lambda i, j, k: (k, j)),
                pl.BlockSpec((1, tn), lambda i, j, k: (0, j)),
            ],
            out_specs=pl.BlockSpec((tm, tn), lambda i, j, k: (i, j)),
            scratch_shapes=[pltpu.VMEM((tm, tn), jnp.float32)],
            compiler_params=pltpu.CompilerParams(
                dimension_semantics=("parallel", "parallel", "arbitrary"),
                vmem_limit_bytes=_VMEM_LIMIT),
            cost_estimate=cost,
        )(a, b, bias)

    if Mp != M or Np != N:
        out = out[:M, :N]
    return out


# ---------------------------------------------------------------------------
# Pallas 2x2 stride-2 max-pool (lane-dense (N*Ho, Wo*C) layout)
# ---------------------------------------------------------------------------
def _max4_kernel(a_ref, b_ref, c_ref, d_ref, o_ref):
    o_ref[...] = jnp.maximum(jnp.maximum(a_ref[...], b_ref[...]),
                             jnp.maximum(c_ref[...], d_ref[...]))


@jax.jit
def maxpool2x2(x):
    """nn.MaxPool2d(2, 2) on NHWC input (H, W even)."""
    N, H, W, C = x.shape
    Ho, Wo = H // 2, W // 2
    rows, lanes = N * Ho, Wo * C
    # window extraction = strided slicing (glue); the max runs in Pallas
    xs = [x[:, di::2, dj::2, :].reshape(rows, lanes)
          for di in (0, 1) for dj in (0, 1)]

    itemsize = jnp.dtype(x.dtype).itemsize
    g = 8 if itemsize >= 4 else 16       # sublane granularity
    if rows <= g:
        bm, Mp = rows, rows
    else:
        cap = max(g, ((512 * 1024) // (lanes * itemsize)) // g * g)
        bm = min(_round_up(rows, g), cap, 256)
        Mp = _round_up(rows, bm)

    pad = (lambda a: a) if Mp == rows else (
        lambda a: jnp.pad(a, ((0, Mp - rows), (0, 0))))

    out = pl.pallas_call(
        _max4_kernel,
        out_shape=jax.ShapeDtypeStruct((Mp, lanes), x.dtype),
        grid=(Mp // bm,),
        in_specs=[pl.BlockSpec((bm, lanes), lambda i: (i, 0))] * 4,
        out_specs=pl.BlockSpec((bm, lanes), lambda i: (i, 0)),
        compiler_params=pltpu.CompilerParams(
            dimension_semantics=("parallel",),
            vmem_limit_bytes=_VMEM_LIMIT),
        cost_estimate=pl.CostEstimate(
            flops=3 * Mp * lanes, transcendentals=0,
            bytes_accessed=5 * Mp * lanes * itemsize),
    )(*[pad(a) for a in xs])
    return out[:rows].reshape(N, Ho, Wo, C)


# ---------------------------------------------------------------------------
# Convolution = im2col (JAX glue, bf16) + Pallas matmul
# ---------------------------------------------------------------------------
def _im2col(x, k, stride, pad):
    N, H, W, C = x.shape
    if k == 1 and stride == 1 and pad == 0:
        return x.reshape(N * H * W, C), H, W
    if pad:
        x = jnp.pad(x, ((0, 0), (pad, pad), (pad, pad), (0, 0)))
    Ho = (H + 2 * pad - k) // stride + 1
    Wo = (W + 2 * pad - k) // stride + 1
    cols = [x[:, i:i + stride * Ho:stride, j:j + stride * Wo:stride, :]
            for i in range(k) for j in range(k)]
    patches = jnp.stack(cols, axis=3)               # (N, Ho, Wo, k*k, C)
    return patches.reshape(N * Ho * Wo, k * k * C), Ho, Wo


@functools.partial(jax.jit, static_argnames=("stride", "pad"))
def conv2d(x, w, b, *, stride, pad):
    """x: (N,H,W,Cin) NHWC; w: (k,k,Cin,Cout) HWIO; b: (Cout,)."""
    N = x.shape[0]
    k, _, cin, cout = w.shape
    patches, Ho, Wo = _im2col(x.astype(jnp.bfloat16), k, stride, pad)
    out = matmul_bias(patches, w.reshape(k * k * cin, cout), b,
                      out_dtype=jnp.bfloat16)
    return out.reshape(N, Ho, Wo, cout)


# ---------------------------------------------------------------------------
# YOLO_V1 architecture (exact layer specs of the PyTorch module)
# ---------------------------------------------------------------------------
def _conv_cfg():
    # (kernel, cin, cout, stride, pad), grouped into the module's Sequentials.
    blocks = []
    blocks.append(([(7, 3, 64, 2, 3)], True))                              # Conv_448
    blocks.append(([(3, 64, 192, 1, 1)], True))                            # Conv_112
    blocks.append(([(1, 192, 128, 1, 0), (3, 128, 256, 1, 1),
                    (1, 256, 256, 1, 0), (3, 256, 512, 1, 1)], True))      # Conv_56
    c28 = []
    for _ in range(4):
        c28 += [(1, 512, 256, 1, 0), (3, 256, 512, 1, 1)]
    c28 += [(1, 512, 512, 1, 0), (3, 512, 1024, 1, 1)]
    blocks.append((c28, True))                                             # Conv_28
    blocks.append(([(1, 1024, 512, 1, 0), (3, 512, 1024, 1, 1),
                    (1, 1024, 512, 1, 0), (3, 512, 1024, 1, 1),
                    (3, 1024, 1024, 1, 1), (3, 1024, 1024, 2, 1)], False)) # Conv_14
    blocks.append(([(3, 1024, 1024, 1, 1), (3, 1024, 1024, 1, 1)], False)) # Conv_7
    return blocks


def init_params(key, *, image_size=448, B=2, classes=20):
    """All conv layers keep the exact PyTorch channel/kernel/stride/pad specs.

    image_size=448 gives the module's hard-coded 7*7*1024 flatten and the
    7x7x(B*5+classes) output grid; smaller multiples of 64 shrink the final
    grid (and hence the FC in/out features) proportionally for fast testing.
    """
    assert image_size % 64 == 0
    S = image_size // 64
    params = {"conv": [], "fc": [], "out_channels": B * 5 + classes}
    for convs, pool in _conv_cfg():
        blk = {"convs": [], "pool": pool}
        for (k, cin, cout, s, p) in convs:
            key, kw_, kb_ = jax.random.split(key, 3)
            fan_in = k * k * cin
            w = jax.random.normal(kw_, (k, k, cin, cout), jnp.float32) / math.sqrt(fan_in)
            b = jax.random.normal(kb_, (cout,), jnp.float32) * 0.01
            blk["convs"].append((w, b, s, p))
        params["conv"].append(blk)
    fc_dims = [(S * S * 1024, 4096), (4096, S * S * (B * 5 + classes))]
    for din, dout in fc_dims:
        key, kw_, kb_ = jax.random.split(key, 3)
        w = jax.random.normal(kw_, (din, dout), jnp.float32) / math.sqrt(din)
        b = jax.random.normal(kb_, (dout,), jnp.float32) * 0.01
        params["fc"].append((w, b))
    return params


def yolo_v1_forward(params, x):
    """x: (N, H, W, 3) NHWC -> (N, S, S, B*5+classes) with S = H // 64."""
    # PyTorch: x.permute(0,3,1,2) (NHWC -> NCHW).  We stay NHWC -> no-op here.
    x = x.astype(jnp.bfloat16)
    for blk in params["conv"]:
        for (w, b, stride, pad) in blk["convs"]:
            x = conv2d(x, w, b, stride=stride, pad=pad)
        if blk["pool"]:
            x = maxpool2x2(x)
    N, S, _, C = x.shape
    # PyTorch flattens in NCHW (channel-major) order: transpose then flatten.
    x = jnp.transpose(x, (0, 3, 1, 2)).reshape(N, C * S * S)
    w1, b1 = params["fc"][0]
    x = matmul_bias(x, w1, b1, out_dtype=jnp.bfloat16)
    w2, b2 = params["fc"][1]
    x = matmul_bias(x, w2, b2, apply_sigmoid=True, out_dtype=jnp.float32)  # fused nn.Sigmoid
    return x.reshape(N, S, S, params["out_channels"])


if __name__ == "__main__":
    key = jax.random.PRNGKey(0)
    pkey, xkey = jax.random.split(key)
    # Small smoke test: every conv layer keeps the module's exact specs; only
    # the input resolution is reduced (64 instead of 448), so the final grid is
    # 1x1 instead of 7x7 and the FC in/out features adapt accordingly.  Using
    # image_size=448 reproduces the module's 7*7*1024 flatten exactly but is
    # far too heavy for the smoke-test time budget.
    image_size, batch = 64, 2
    params = init_params(pkey, image_size=image_size)
    x = jax.random.normal(xkey, (batch, image_size, image_size, 3), jnp.float32)

    out = jax.block_until_ready(yolo_v1_forward(params, x))
    S = image_size // 64
    assert out.shape == (batch, S, S, 2 * 5 + 20), out.shape
    assert bool(jnp.all(jnp.isfinite(out)))
    print("KERNEL_OK")
</pallas_src>

<mosaic_0001>
module attributes {stable_mosaic.version = 11 : i64} {
  func.func @_matmul_bias_kernel_1k(%arg0: i32, %arg1: i32, %arg2: memref<512x147xbf16, #tpu.memory_space<vmem>>, %arg3: memref<147x64xbf16, #tpu.memory_space<vmem>>, %arg4: memref<1x64xf32, #tpu.memory_space<vmem>>, %arg5: memref<512x64xbf16, #tpu.memory_space<vmem>>) attributes {dimension_semantics = [#tpu.dimension_semantics<parallel>, #tpu.dimension_semantics<parallel>], iteration_bounds = array<i64: 4, 1>, scalar_prefetch = 0 : i64, scratch_operands = 0 : i64, tpu.core_type = #tpu.core_type<tc>, window_params = [{transform_indices = @transform_0, window_bounds = array<i64: 512, 147>}, {transform_indices = @transform_1, window_bounds = array<i64: 147, 64>}, {transform_indices = @transform_2, window_bounds = array<i64: 1, 64>}, {transform_indices = @transform_3, window_bounds = array<i64: 512, 64>}]} {
    %c0 = arith.constant 0 : index
    %c0_0 = arith.constant 0 : index
    %0 = vector.load %arg2[%c0, %c0_0] : memref<512x147xbf16, #tpu.memory_space<vmem>>, vector<512x147xbf16>
    %c0_1 = arith.constant 0 : index
    %c0_2 = arith.constant 0 : index
    %1 = vector.load %arg3[%c0_1, %c0_2] : memref<147x64xbf16, #tpu.memory_space<vmem>>, vector<147x64xbf16>
    %cst = arith.constant dense<0.000000e+00> : vector<512x64xf32>
    %2 = tpu.matmul %0, %1, %cst {dimension_numbers = #tpu.dot_dimension_numbers<[1], [0], [0], [1], [0, 0, 1, 1], [], []>} : vector<512x147xbf16>, vector<147x64xbf16>, vector<512x64xf32> -> vector<512x64xf32>
    %c0_3 = arith.constant 0 : index
    %c0_4 = arith.constant 0 : index
    %3 = vector.load %arg4[%c0_3, %c0_4] : memref<1x64xf32, #tpu.memory_space<vmem>>, vector<1x64xf32>
    %4 = vector.broadcast %3 : vector<1x64xf32> to vector<512x64xf32>
    %5 = arith.addf %2, %4 : vector<512x64xf32>
    %6 = arith.truncf %5 : vector<512x64xf32> to vector<512x64xbf16>
    %c0_5 = arith.constant 0 : index
    %c0_6 = arith.constant 0 : index
    %7 = vector.load %arg5[%c0_5, %c0_6] : memref<512x64xbf16, #tpu.memory_space<vmem>>, vector<512x64xbf16>
    tpu.vector_store %arg5[%c0_5, %c0_6], %6 {strides = array<i32>} : memref<512x64xbf16, #tpu.memory_space<vmem>>, vector<512x64xbf16>,
    return
  }
  func.func @transform_0(%arg0: i32, %arg1: i32) -> (i32, i32) {
    %c0_i32 = arith.constant 0 : i32
    %c0_i32_0 = arith.constant 0 : i32
    return %arg0, %c0_i32 : i32, i32
  }
  func.func @transform_1(%arg0: i32, %arg1: i32) -> (i32, i32) {
    %c0_i32 = arith.constant 0 : i32
    %c0_i32_0 = arith.constant 0 : i32
    return %c0_i32, %arg1 : i32, i32
  }
  func.func @transform_2(%arg0: i32, %arg1: i32) -> (i32, i32) {
    %c0_i32 = arith.constant 0 : i32
    %c0_i32_0 = arith.constant 0 : i32
    return %c0_i32, %arg1 : i32, i32
  }
  func.func @transform_3(%arg0: i32, %arg1: i32) -> (i32, i32) {
    %c0_i32 = arith.constant 0 : i32
    return %arg0, %arg1 : i32, i32
  }
}

</mosaic_0001>

<llo_original>
// kernel: matmul_bias.1
$region0: #{matmul_bias.1}
  #allocation0 [shape = 'u32[]', space=smem, size = 0x4, offset = 0x4, fixed_abs, tag = 'smem constant byte address 0x4 - core index']
  #allocation1 [shape = 'u32[144,128]{1,0:T(1,128)}', space=vmem, size = 0x12000, scoped, tag = 'internal scratch']
  %s0 = inlined_call_operand.vmem [shape: bf16[2048,147], index: 0, kind: input, shape index: {}]
  %s1 = inlined_call_operand.vmem [shape: bf16[147,64], index: 1, kind: input, shape index: {}]
  %s2 = inlined_call_operand.vmem [shape: f32[1,64], index: 2, kind: input, shape index: {}]
  %s3 = inlined_call_operand.vmem [shape: bf16[2048,64], index: 3, kind: output, shape index: {}]
  %s4 = sld [smem:[#allocation0]]
  $region45: #{matmul_bias.1} parent=0
    _
  %s6 = ssub.s32 1, %s4
  %s7 = scalar_select 0, %s6, %s4
  loop: start=0, step=1, limit=6
  $region2: #{matmul_bias.1} parent=0 // loop_pre_header
    _
  $region3: #{matmul_bias.1} parent=0 // loop_header
    %s9 = sphi 0, %s13
    %p10 = scmp.ge.s32.totalorder %s9, 6
    %s16 = sphi 0, %s28
    %s17 = sphi 0, %s24
    %s18 = sphi 0, %s16
    %s19 = sphi 0, %s17
    %s20 = sphi 0, %s18
    %s21 = sphi 0, %s19
    %s31 = sphi 0, %s33
    %s34 = sphi 0, %s31
    %s35 = sphi 0, %s34
    %s51 = sphi 0, %s35
    %s57 = sphi 0, %s59
    %s60 = sphi 0, %s57
    %s61 = sphi 0, %s60
    %s77 = sphi 0, %s61
    %s83 = sphi 0, %s85
    %s86 = sphi 0, %s83
    %s87 = sphi 0, %s86
    %s103 = sphi 0, %s87
    %s111 = sphi 0, %s113
    %s114 = sphi 0, %s111
    %s115 = sphi 0, %s114
    %s131 = sphi 0, %s115
  $region4: #{matmul_bias.1} parent=0 // loop_header_branch
    %12 = sbr.rel (%p10) target = $region8
  $region5: #{matmul_bias.1} parent=0 // loop_body
    %s14 = ssub.s32 %s9, 1
    %s15 = ssub.s32 %s9, 2
    %s22 = sadd.s32 1, %s17
    %p23 = scmp.ge.s32.totalorder %s22, 1
    %s24 = scalar_select %p23, 0, %s22
    %s25 = sadd.s32 1, %s16
    %s26 = scalar_select %p23, %s25, %s16
    %p27 = scmp.ge.s32.totalorder %s26, 4
    %s28 = scalar_select %p27, 0, %s26
    %s29 = ssub.s32 %s16, %s28
    %p30 = scmp.eq.s32.totalorder %s29, 0
    %s32 = sadd.s32 %s31, 1
    %s33 = scalar_select %p30, %s31, %s32
    %p36 = pneg %p30
    %p37 = scmp.eq.s32.totalorder %s9, 3
    %p38 = por %p36, %p37
    %p39 = scmp.ne.s32.totalorder %s31, %s34
    %p40 = scmp.eq.s32.totalorder %s9, 0
    %p41 = por %p39, %p40
    %p42 = scmp.ne.s32.totalorder %s31, %s34
    %p43 = scmp.eq.s32.totalorder %s14, 3
    %p44 = por %p42, %p43
    %p45 = scmp.ne.s32.totalorder %s34, %s35
    %p46 = scmp.eq.s32.totalorder %s14, 0
    %p47 = por %p45, %p46
    %p48 = scmp.ne.s32.totalorder %s34, %s35
    %p49 = scmp.eq.s32.totalorder %s15, 3
    %p50 = por %p48, %p49
    %p52 = scmp.ne.s32.totalorder %s35, %s51
    %p53 = scmp.eq.s32.totalorder %s15, 0
    %p54 = por %p52, %p53
    %s55 = ssub.s32 %s17, %s24
    %p56 = scmp.eq.s32.totalorder %s55, 0
    %s58 = sadd.s32 %s57, 1
    %s59 = scalar_select %p56, %s57, %s58
    %p62 = pneg %p56
    %p63 = scmp.eq.s32.totalorder %s9, 3
    %p64 = por %p62, %p63
    %p65 = scmp.ne.s32.totalorder %s57, %s60
    %p66 = scmp.eq.s32.totalorder %s9, 0
    %p67 = por %p65, %p66
    %p68 = scmp.ne.s32.totalorder %s57, %s60
    %p69 = scmp.eq.s32.totalorder %s14, 3
    %p70 = por %p68, %p69
    %p71 = scmp.ne.s32.totalorder %s60, %s61
    %p72 = scmp.eq.s32.totalorder %s14, 0
    %p73 = por %p71, %p72
    %p74 = scmp.ne.s32.totalorder %s60, %s61
    %p75 = scmp.eq.s32.totalorder %s15, 3
    %p76 = por %p74, %p75
    %p78 = scmp.ne.s32.totalorder %s61, %s77
    %p79 = scmp.eq.s32.totalorder %s15, 0
    %p80 = por %p78, %p79
    %s81 = ssub.s32 %s17, %s24
    %p82 = scmp.eq.s32.totalorder %s81, 0
    %s84 = sadd.s32 %s83, 1
    %s85 = scalar_select %p82, %s83, %s84
    %p88 = pneg %p82
    %p89 = scmp.eq.s32.totalorder %s9, 3
    %p90 = por %p88, %p89
    %p91 = scmp.ne.s32.totalorder %s83, %s86
    %p92 = scmp.eq.s32.totalorder %s9, 0
    %p93 = por %p91, %p92
    %p94 = scmp.ne.s32.totalorder %s83, %s86
    %p95 = scmp.eq.s32.totalorder %s14, 3
    %p96 = por %p94, %p95
    %p97 = scmp.ne.s32.totalorder %s86, %s87
    %p98 = scmp.eq.s32.totalorder %s14, 0
    %p99 = por %p97, %p98
    %p100 = scmp.ne.s32.totalorder %s86, %s87
    %p101 = scmp.eq.s32.totalorder %s15, 3
    %p102 = por %p100, %p101
    %p104 = scmp.ne.s32.totalorder %s87, %s103
    %p105 = scmp.eq.s32.totalorder %s15, 0
    %p106 = por %p104, %p105
    %s107 = ssub.s32 %s16, %s28
    %s108 = ssub.s32 %s17, %s24
    %s109 = sor.u32 %s107, %s108
    %p110 = scmp.eq.s32.totalorder %s109, 0
    %s112 = sadd.s32 %s111, 1
    %s113 = scalar_select %p110, %s111, %s112
    %p116 = pneg %p110
    %p117 = scmp.eq.s32.totalorder %s9, 3
    %p118 = por %p116, %p117
    %p119 = scmp.ne.s32.totalorder %s111, %s114
    %p120 = scmp.eq.s32.totalorder %s9, 0
    %p121 = por %p119, %p120
    %p122 = scmp.ne.s32.totalorder %s111, %s114
    %p123 = scmp.eq.s32.totalorder %s14, 3
    %p124 = por %p122, %p123
    %p125 = scmp.ne.s32.totalorder %s114, %s115
    %p126 = scmp.eq.s32.totalorder %s14, 0
    %p127 = por %p125, %p126
    %p128 = scmp.ne.s32.totalorder %s114, %s115
    %p129 = scmp.eq.s32.totalorder %s15, 3
    %p130 = por %p128, %p129
    %p132 = scmp.ne.s32.totalorder %s115, %s131
    %p133 = scmp.eq.s32.totalorder %s15, 0
    %p134 = por %p132, %p133
    %p135 = scmp.le.s32.totalorder 1, %s9
    %p136 = scmp.lt.s32.totalorder %s9, 5
    %p137 = pnand %p135, %p136
    %p138 = pneg %p137
    // Predicated region
    $region9: #{matmul_bias.1} parent=5 // pred_check
      _
    $region10: #{matmul_bias.1} parent=5 // pred_check_branch
      %140 = sbr.rel (%p137) target = $region12
    $region11: #{matmul_bias.1} parent=5 // pred_region
      %s141 = ssub.s32 %s9, 1
      // Predicated region
      $region13: #{matmul_bias.1} parent=11 // pred_check
        %p142 = pneg %p73
      $region14: #{matmul_bias.1} parent=11 // pred_check_branch
        %144 = sbr.rel (%p142) target = $region16
      $region15: #{matmul_bias.1} parent=11 // pred_region
        %p145 = scmp.lt.s32.totalorder %s19, 0
        %s146 = scalar_select %p145, %s19, 0
        %s147 = smul.addr %s146, 4
        %s148 = scalar_lea.vmem %s1, %s147
      $region16: #{matmul_bias.1} parent=11 // pred_fallthru
        _
      // Predicated region
      $region17: #{matmul_bias.1} parent=11 // pred_check
        %p149 = pneg %p99
      $region18: #{matmul_bias.1} parent=11 // pred_check_branch
        %151 = sbr.rel (%p149) target = $region20
      $region19: #{matmul_bias.1} parent=11 // pred_region
        %p152 = scmp.lt.s32.totalorder %s19, 0
        %s153 = scalar_select %p152, %s19, 0
        %s154 = scalar_lea.vmem %s2, %s153
      $region20: #{matmul_bias.1} parent=11 // pred_fallthru
        _
    $region12: #{matmul_bias.1} parent=5 // pred_fallthru
      _
    %p155 = scmp.lt.s32.totalorder %s9, 4
    // Predicated region
    $region21: #{matmul_bias.1} parent=5 // pred_check
      %p156 = pneg %p155
    $region22: #{matmul_bias.1} parent=5 // pred_check_branch
      %158 = sbr.rel (%p156) target = $region24
    $region23: #{matmul_bias.1} parent=5 // pred_region
      // Predicated region
      $region25: #{matmul_bias.1} parent=23 // pred_check
        %p159 = pneg %p41
      $region26: #{matmul_bias.1} parent=23 // pred_check_branch
        %161 = sbr.rel (%p159) target = $region28
      $region27: #{matmul_bias.1} parent=23 // pred_region
        %s162 = smul.u32 64, %s16
        %p163 = scmp.lt.s32.totalorder %s162, 255
        %s164 = scalar_select %p163, %s162, 255
        %s165 = smul.addr %s164, 2
        %s166 = smul.addr %s165, 4
        %s167 = scalar_lea.vmem %s0, %s166
        %s168 = smul.u32 64, %s16
      $region28: #{matmul_bias.1} parent=23 // pred_fallthru
        _
    $region24: #{matmul_bias.1} parent=5 // pred_fallthru
      _
    %p169 = scmp.le.s32.totalorder 1, %s9
    %p170 = scmp.lt.s32.totalorder %s9, 5
    %p171 = pnand %p169, %p170
    %p172 = pneg %p171
    // Predicated region
    $region29: #{matmul_bias.1} parent=5 // pred_check
      _
    $region30: #{matmul_bias.1} parent=5 // pred_check_branch
      %174 = sbr.rel (%p171) target = $region32
    $region31: #{matmul_bias.1} parent=5 // pred_region
      %s175 = ssub.s32 %s9, 1
      %s176 = smul.u32 64, %s18
      %p177 = scmp.lt.s32.totalorder %s176, 255
      %s178 = scalar_select %p177, %s176, 255
      %s179 = smul.addr %s178, 2
      %s180 = smul.addr %s179, 4
      %s181 = scalar_lea.vmem %s0, %s180
      %p182 = pneg %p47
      %p183 = pneg %p44
      %p184 = scmp.lt.s32.totalorder %s19, 0
      %s185 = scalar_select %p184, %s19, 0
      %s186 = smul.addr %s185, 4
      %s187 = scalar_lea.vmem %s1, %s186
      %p188 = pneg %p73
      %p189 = pneg %p70
      %p190 = scmp.lt.s32.totalorder %s19, 0
      %s191 = scalar_select %p190, %s19, 0
      %s192 = scalar_lea.vmem %s2, %s191
      %p193 = pneg %p99
      %p194 = pneg %p96
      %p195 = pneg %p127
      %p196 = pneg %p124
      %s197 = smul.u32 64, %s18
      %p198 = scmp.lt.s32.totalorder %s197, 255
      %s199 = scalar_select %p198, %s197, 255
      %p200 = scmp.lt.s32.totalorder %s19, 0
      %s201 = scalar_select %p200, %s19, 0
      %s202 = sadd.s32 %s201, %s199
      %s203 = smul.addr %s202, 4
      %s204 = scalar_lea.vmem %s3, %s203
      %s205 = smul.u32 64, %s18
      %p206 = scmp.lt.s32.totalorder %s205, 255
      %s207 = scalar_select %p206, %s205, 255
      %s208 = smul.addr %s207, 2
      %s209 = smul.addr %s208, 4
      %s210 = scalar_lea.vmem %s0, %s209
      %s211 = smul.u32 64, %s18
      %p212 = scmp.lt.s32.totalorder %s19, 0
      %s213 = scalar_select %p212, %s19, 0
      %s214 = smul.addr %s213, 4
      %s215 = scalar_lea.vmem %s1, %s214
      %p216 = scmp.lt.s32.totalorder %s19, 0
      %s217 = scalar_select %p216, %s19, 0
      %s218 = scalar_lea.vmem %s2, %s217
      %s219 = smul.u32 64, %s18
      %p220 = scmp.lt.s32.totalorder %s219, 255
      %s221 = scalar_select %p220, %s219, 255
      %p222 = scmp.lt.s32.totalorder %s19, 0
      %s223 = scalar_select %p222, %s19, 0
      %s224 = sadd.s32 %s223, %s221
      %s225 = smul.addr %s224, 4
      %s226 = scalar_lea.vmem %s3, %s225
      %s227 = smul.u32 64, %s18
      %v229 = vld [vmem:[%s210] sm:$0xff]
      %v230 = vld [vmem:[%s210 + $0x8] sm:$0xff]
      %v231 = vld [vmem:[%s210 + $0x10] sm:$0xff]
      %v232 = vld [vmem:[%s210 + $0x18] sm:$0xff]
      %v233 = vld [vmem:[%s210 + $0x20] sm:$0xff]
      %v234 = vld [vmem:[%s210 + $0x28] sm:$0xff]
      %v235 = vld [vmem:[%s210 + $0x30] sm:$0xff]
      %v236 = vld [vmem:[%s210 + $0x38] sm:$0xff]
      %v237 = vld [vmem:[%s210 + $0x40] sm:$0xff]
      %v238 = vld [vmem:[%s210 + $0x48] sm:$0xff]
      %v239 = vld [vmem:[%s210 + $0x50] sm:$0xff]
      %v240 = vld [vmem:[%s210 + $0x58] sm:$0xff]
      %v241 = vld [vmem:[%s210 + $0x60] sm:$0xff]
      %v242 = vld [vmem:[%s210 + $0x68] sm:$0xff]
      %v243 = vld [vmem:[%s210 + $0x70] sm:$0xff]
      %v244 = vld [vmem:[%s210 + $0x78] sm:$0xff]
      %v245 = vld [vmem:[%s210 + $0x80] sm:$0xff]
      %v246 = vld [vmem:[%s210 + $0x88] sm:$0xff]
      %v247 = vld [vmem:[%s210 + $0x90] sm:$0xff]
      %v248 = vld [vmem:[%s210 + $0x98] sm:$0xff]
      %v249 = vld [vmem:[%s210 + $0xa0] sm:$0xff]
      %v250 = vld [vmem:[%s210 + $0xa8] sm:$0xff]
      %v251 = vld [vmem:[%s210 + $0xb0] sm:$0xff]
      %v252 = vld [vmem:[%s210 + $0xb8] sm:$0xff]
      %v253 = vld [vmem:[%s210 + $0xc0] sm:$0xff]
      %v254 = vld [vmem:[%s210 + $0xc8] sm:$0xff]
      %v255 = vld [vmem:[%s210 + $0xd0] sm:$0xff]
      %v256 = vld [vmem:[%s210 + $0xd8] sm:$0xff]
      %v257 = vld [vmem:[%s210 + $0xe0] sm:$0xff]
      %v258 = vld [vmem:[%s210 + $0xe8] sm:$0xff]
      %v259 = vld [vmem:[%s210 + $0xf0] sm:$0xff]
      %v260 = vld [vmem:[%s210 + $0xf8] sm:$0xff]
      %v261 = vld [vmem:[%s210 + $0x100] sm:$0xff]
      %v262 = vld [vmem:[%s210 + $0x108] sm:$0xff]
      %v263 = vld [vmem:[%s210 + $0x110] sm:$0xff]
      %v264 = vld [vmem:[%s210 + $0x118] sm:$0xff]
      %v265 = vld [vmem:[%s210 + $0x120] sm:$0xff]
      %v266 = vld [vmem:[%s210 + $0x128] sm:$0xff]
      %v267 = vld [vmem:[%s210 + $0x130] sm:$0xff]
      %v268 = vld [vmem:[%s210 + $0x138] sm:$0xff]
      %v269 = vld [vmem:[%s210 + $0x140] sm:$0xff]
      %v270 = vld [vmem:[%s210 + $0x148] sm:$0xff]
      %v271 = vld [vmem:[%s210 + $0x150] sm:$0xff]
      %v272 = vld [vmem:[%s210 + $0x158] sm:$0xff]
      %v273 = vld [vmem:[%s210 + $0x160] sm:$0xff]
      %v274 = vld [vmem:[%s210 + $0x168] sm:$0xff]
      %v275 = vld [vmem:[%s210 + $0x170] sm:$0xff]
      %v276 = vld [vmem:[%s210 + $0x178] sm:$0xff]
      %v277 = vld [vmem:[%s210 + $0x180] sm:$0xff]
      %v278 = vld [vmem:[%s210 + $0x188] sm:$0xff]
      %v279 = vld [vmem:[%s210 + $0x190] sm:$0xff]
      %v280 = vld [vmem:[%s210 + $0x198] sm:$0xff]
      %v281 = vld [vmem:[%s210 + $0x1a0] sm:$0xff]
      %v282 = vld [vmem:[%s210 + $0x1a8] sm:$0xff]
      %v283 = vld [vmem:[%s210 + $0x1b0] sm:$0xff]
      %v284 = vld [vmem:[%s210 + $0x1b8] sm:$0xff]
      %v285 = vld [vmem:[%s210 + $0x1c0] sm:$0xff]
      %v286 = vld [vmem:[%s210 + $0x1c8] sm:$0xff]
      %v287 = vld [vmem:[%s210 + $0x1d0] sm:$0xff]
      %v288 = vld [vmem:[%s210 + $0x1d8] sm:$0xff]
      %v289 = vld [vmem:[%s210 + $0x1e0] sm:$0xff]
      %v290 = vld [vmem:[%s210 + $0x1e8] sm:$0xff]
      %v291 = vld [vmem:[%s210 + $0x1f0] sm:$0xff]
      %v292 = vld [vmem:[%s210 + $0x1f8] sm:$0xff]
      %v293 = vld [vmem:[%s215] sm:$0xf]
      %v294 = vld [vmem:[%s215 + $0x4] sm:$0xf]
      %v295 = vld [vmem:[%s215 + $0x8] sm:$0xf]
      %v296 = vld [vmem:[%s215 + $0xc] sm:$0xf]
      %v297 = vld [vmem:[%s215 + $0x10] sm:$0xf]
      %v298 = vld [vmem:[%s215 + $0x14] sm:$0xf]
      %v299 = vld [vmem:[%s215 + $0x18] sm:$0xf]
      %v300 = vld [vmem:[%s215 + $0x1c] sm:$0xf]
      %v301 = vld [vmem:[%s215 + $0x20] sm:$0xf]
      %v302 = vld [vmem:[%s215 + $0x24] sm:$0xf]
      %v303 = vld [vmem:[%s215 + $0x28] sm:$0xf]
      %v304 = vld [vmem:[%s215 + $0x2c] sm:$0xf]
      %v305 = vld [vmem:[%s215 + $0x30] sm:$0xf]
      %v306 = vld [vmem:[%s215 + $0x34] sm:$0xf]
      %v307 = vld [vmem:[%s215 + $0x38] sm:$0xf]
      %v308 = vld [vmem:[%s215 + $0x3c] sm:$0xf]
      %v309 = vld [vmem:[%s215 + $0x40] sm:$0xf]
      %v310 = vld [vmem:[%s215 + $0x44] sm:$0xf]
      %v311 = vld [vmem:[%s215 + $0x48] sm:$0x3]
      %v312 = vld [vmem:[%s218] sm:$0x1]
      %v314 = vlaneseq
      %v315 = vshrl.u32 %v314, 7
      %v316 = vsub.s32 0, %v315
      %v317 = vrot.slane %v312, %v316
      %v383 = vunpack.c.l.b16 %v229
      %v384 = vunpack.c.h.b16 %v229
      %v385 = vunpack.c.l.b16 %v230
      %v386 = vunpack.c.h.b16 %v230
      %v387 = vunpack.c.l.b16 %v231
      %v388 = vunpack.c.h.b16 %v231
      %v389 = vunpack.c.l.b16 %v232
      %v390 = vunpack.c.h.b16 %v232
      %v391 = vunpack.c.l.b16 %v233
      %v392 = vunpack.c.h.b16 %v233
      %v393 = vunpack.c.l.b16 %v234
      %v394 = vunpack.c.h.b16 %v234
      %v395 = vunpack.c.l.b16 %v235
      %v396 = vunpack.c.h.b16 %v235
      %v397 = vunpack.c.l.b16 %v236
      %v398 = vunpack.c.h.b16 %v236
      %v399 = vunpack.c.l.b16 %v237
      %v400 = vunpack.c.h.b16 %v237
      %v401 = vunpack.c.l.b16 %v238
      %v402 = vunpack.c.h.b16 %v238
      %v403 = vunpack.c.l.b16 %v239
      %v404 = vunpack.c.h.b16 %v239
      %v405 = vunpack.c.l.b16 %v240
      %v406 = vunpack.c.h.b16 %v240
      %v407 = vunpack.c.l.b16 %v241
      %v408 = vunpack.c.h.b16 %v241
      %v409 = vunpack.c.l.b16 %v242
      %v410 = vunpack.c.h.b16 %v242
      %v411 = vunpack.c.l.b16 %v243
      %v412 = vunpack.c.h.b16 %v243
      %v413 = vunpack.c.l.b16 %v244
      %v414 = vunpack.c.h.b16 %v244
      %v415 = vunpack.c.l.b16 %v245
      %v416 = vunpack.c.h.b16 %v245
      %v417 = vunpack.c.l.b16 %v246
      %v418 = vunpack.c.h.b16 %v246
      %v419 = vunpack.c.l.b16 %v247
      %v420 = vunpack.c.h.b16 %v247
      %v421 = vunpack.c.l.b16 %v248
      %v422 = vunpack.c.h.b16 %v248
      %v423 = vunpack.c.l.b16 %v249
      %v424 = vunpack.c.h.b16 %v249
      %v425 = vunpack.c.l.b16 %v250
      %v426 = vunpack.c.h.b16 %v250
      %v427 = vunpack.c.l.b16 %v251
      %v428 = vunpack.c.h.b16 %v251
      %v429 = vunpack.c.l.b16 %v252
      %v430 = vunpack.c.h.b16 %v252
      %v431 = vunpack.c.l.b16 %v253
      %v432 = vunpack.c.h.b16 %v253
      %v433 = vunpack.c.l.b16 %v254
      %v434 = vunpack.c.h.b16 %v254
      %v435 = vunpack.c.l.b16 %v255
      %v436 = vunpack.c.h.b16 %v255
      %v437 = vunpack.c.l.b16 %v256
      %v438 = vunpack.c.h.b16 %v256
      %v439 = vunpack.c.l.b16 %v257
      %v440 = vunpack.c.h.b16 %v257
      %v441 = vunpack.c.l.b16 %v258
      %v442 = vunpack.c.h.b16 %v258
      %v443 = vunpack.c.l.b16 %v259
      %v444 = vunpack.c.h.b16 %v259
      %v445 = vunpack.c.l.b16 %v260
      %v446 = vunpack.c.h.b16 %v260
      %v447 = vunpack.c.l.b16 %v261
      %v448 = vunpack.c.h.b16 %v261
      %v449 = vunpack.c.l.b16 %v262
      %v450 = vunpack.c.h.b16 %v262
      %v451 = vunpack.c.l.b16 %v263
      %v452 = vunpack.c.h.b16 %v263
      %v453 = vunpack.c.l.b16 %v264
      %v454 = vunpack.c.h.b16 %v264
      %v455 = vunpack.c.l.b16 %v265
      %v456 = vunpack.c.h.b16 %v265
      %v457 = vunpack.c.l.b16 %v266
      %v458 = vunpack.c.h.b16 %v266
      %v459 = vunpack.c.l.b16 %v267
      %v460 = vunpack.c.h.b16 %v267
      %v461 = vunpack.c.l.b16 %v268
      %v462 = vunpack.c.h.b16 %v268
      %v463 = vunpack.c.l.b16 %v269
      %v464 = vunpack.c.h.b16 %v269
      %v465 = vunpack.c.l.b16 %v270
      %v466 = vunpack.c.h.b16 %v270
      %v467 = vunpack.c.l.b16 %v271
      %v468 = vunpack.c.h.b16 %v271
      %v469 = vunpack.c.l.b16 %v272
      %v470 = vunpack.c.h.b16 %v272
      %v471 = vunpack.c.l.b16 %v273
      %v472 = vunpack.c.h.b16 %v273
      %v473 = vunpack.c.l.b16 %v274
      %v474 = vunpack.c.h.b16 %v274
      %v475 = vunpack.c.l.b16 %v275
      %v476 = vunpack.c.h.b16 %v275
      %v477 = vunpack.c.l.b16 %v276
      %v478 = vunpack.c.h.b16 %v276
      %v479 = vunpack.c.l.b16 %v277
      %v480 = vunpack.c.h.b16 %v277
      %v481 = vunpack.c.l.b16 %v278
      %v482 = vunpack.c.h.b16 %v278
      %v483 = vunpack.c.l.b16 %v279
      %v484 = vunpack.c.h.b16 %v279
      %v485 = vunpack.c.l.b16 %v280
      %v486 = vunpack.c.h.b16 %v280
      %v487 = vunpack.c.l.b16 %v281
      %v488 = vunpack.c.h.b16 %v281
      %v489 = vunpack.c.l.b16 %v282
      %v490 = vunpack.c.h.b16 %v282
      %v491 = vunpack.c.l.b16 %v283
      %v492 = vunpack.c.h.b16 %v283
      %v493 = vunpack.c.l.b16 %v284
      %v494 = vunpack.c.h.b16 %v284
      %v495 = vunpack.c.l.b16 %v285
      %v496 = vunpack.c.h.b16 %v285
      %v497 = vunpack.c.l.b16 %v286
      %v498 = vunpack.c.h.b16 %v286
      %v499 = vunpack.c.l.b16 %v287
      %v500 = vunpack.c.h.b16 %v287
      %v501 = vunpack.c.l.b16 %v288
      %v502 = vunpack.c.h.b16 %v288
      %v503 = vunpack.c.l.b16 %v289
      %v504 = vunpack.c.h.b16 %v289
      %v505 = vunpack.c.l.b16 %v290
      %v506 = vunpack.c.h.b16 %v290
      %v507 = vunpack.c.l.b16 %v291
      %v508 = vunpack.c.h.b16 %v291
      %v509 = vunpack.c.l.b16 %v292
      %v510 = vunpack.c.h.b16 %v292
      %v511 = vpack.c.b16 %v385, %v383
      %v512 = vpack.c.b16 %v386, %v384
      %v513 = vpack.c.b16 %v389, %v387
      %v514 = vpack.c.b16 %v390, %v388
      %v515 = vpack.c.b16 %v393, %v391
      %v516 = vpack.c.b16 %v394, %v392
      %v517 = vpack.c.b16 %v397, %v395
      %v518 = vpack.c.b16 %v398, %v396
      %v519 = vpack.c.b16 %v401, %v399
      %v520 = vpack.c.b16 %v402, %v400
      %v521 = vpack.c.b16 %v405, %v403
      %v522 = vpack.c.b16 %v406, %v404
      %v523 = vpack.c.b16 %v409, %v407
      %v524 = vpack.c.b16 %v410, %v408
      %v525 = vpack.c.b16 %v413, %v411
      %v526 = vpack.c.b16 %v414, %v412
      %v527 = vpack.c.b16 %v417, %v415
      %v528 = vpack.c.b16 %v418, %v416
      %v529 = vpack.c.b16 %v421, %v419
      %v530 = vpack.c.b16 %v422, %v420
      %v531 = vpack.c.b16 %v425, %v423
      %v532 = vpack.c.b16 %v426, %v424
      %v533 = vpack.c.b16 %v429, %v427
      %v534 = vpack.c.b16 %v430, %v428
      %v535 = vpack.c.b16 %v433, %v431
      %v536 = vpack.c.b16 %v434, %v432
      %v537 = vpack.c.b16 %v437, %v435
      %v538 = vpack.c.b16 %v438, %v436
      %v539 = vpack.c.b16 %v441, %v439
      %v540 = vpack.c.b16 %v442, %v440
      %v541 = vpack.c.b16 %v445, %v443
      %v542 = vpack.c.b16 %v446, %v444
      %v543 = vpack.c.b16 %v449, %v447
      %v544 = vpack.c.b16 %v450, %v448
      %v545 = vpack.c.b16 %v453, %v451
      %v546 = vpack.c.b16 %v454, %v452
      %v547 = vpack.c.b16 %v457, %v455
      %v548 = vpack.c.b16 %v458, %v456
      %v549 = vpack.c.b16 %v461, %v459
      %v550 = vpack.c.b16 %v462, %v460
      %v551 = vpack.c.b16 %v465, %v463
      %v552 = vpack.c.b16 %v466, %v464
      %v553 = vpack.c.b16 %v469, %v467
      %v554 = vpack.c.b16 %v470, %v468
      %v555 = vpack.c.b16 %v473, %v471
      %v556 = vpack.c.b16 %v474, %v472
      %v557 = vpack.c.b16 %v477, %v475
      %v558 = vpack.c.b16 %v478, %v476
      %v559 = vpack.c.b16 %v481, %v479
      %v560 = vpack.c.b16 %v482, %v480
      %v561 = vpack.c.b16 %v485, %v483
      %v562 = vpack.c.b16 %v486, %v484
      %v563 = vpack.c.b16 %v489, %v487
      %v564 = vpack.c.b16 %v490, %v488
      %v565 = vpack.c.b16 %v493, %v491
      %v566 = vpack.c.b16 %v494, %v492
      %v567 = vpack.c.b16 %v497, %v495
      %v568 = vpack.c.b16 %v498, %v496
      %v569 = vpack.c.b16 %v501, %v499
      %v570 = vpack.c.b16 %v502, %v500
      %v571 = vpack.c.b16 %v505, %v503
      %v572 = vpack.c.b16 %v506, %v504
      %v573 = vpack.c.b16 %v509, %v507
      %v574 = vpack.c.b16 %v510, %v508
      %v626 = vunpack.c.l.b16 %v293
      %v627 = vunpack.c.l.b16 %v294
      %v628 = vunpack.c.l.b16 %v295
      %v629 = vunpack.c.l.b16 %v296
      %v630 = vunpack.c.l.b16 %v297
      %v631 = vunpack.c.l.b16 %v298
      %v632 = vunpack.c.l.b16 %v299
      %v633 = vunpack.c.l.b16 %v300
      %v634 = vunpack.c.l.b16 %v301
      %v635 = vunpack.c.l.b16 %v302
      %v636 = vunpack.c.l.b16 %v303
      %v637 = vunpack.c.l.b16 %v304
      %v638 = vunpack.c.l.b16 %v305
      %v639 = vunpack.c.l.b16 %v306
      %v640 = vunpack.c.l.b16 %v307
      %v641 = vunpack.c.l.b16 %v308
      %v642 = vunpack.c.l.b16 %v309
      %v643 = vunpack.c.l.b16 %v310
      %v644 = vunpack.c.l.b16 %v311
      %v645 = vpack.c.b16 %v627, %v626
      %v646 = vpack.c.b16 %v629, %v628
      %v647 = vpack.c.b16 %v631, %v630
      %v648 = vpack.c.b16 %v633, %v632
      %v649 = vpack.c.b16 %v635, %v634
      %v650 = vpack.c.b16 %v637, %v636
      %v651 = vpack.c.b16 %v639, %v638
      %v652 = vpack.c.b16 %v641, %v640
      %v653 = vpack.c.b16 %v643, %v642
      %v654 = vpack.c.b16 %v644, %v644
      %vm664 = vcmask 154624
      %v666 = vsel %vm664, %v512, 0
      %v669 = vsel %vm664, %v514, 0
      %v672 = vsel %vm664, %v516, 0
      %v675 = vsel %vm664, %v518, 0
      %v678 = vsel %vm664, %v520, 0
      %v681 = vsel %vm664, %v522, 0
      %v684 = vsel %vm664, %v524, 0
      %v687 = vsel %vm664, %v526, 0
      %v690 = vsel %vm664, %v528, 0
      %v693 = vsel %vm664, %v530, 0
      %v696 = vsel %vm664, %v532, 0
      %v699 = vsel %vm664, %v534, 0
      %v702 = vsel %vm664, %v536, 0
      %v705 = vsel %vm664, %v538, 0
      %v708 = vsel %vm664, %v540, 0
      %v711 = vsel %vm664, %v542, 0
      %v714 = vsel %vm664, %v544, 0
      %v717 = vsel %vm664, %v546, 0
      %v720 = vsel %vm664, %v548, 0
      %v723 = vsel %vm664, %v550, 0
      %v726 = vsel %vm664, %v552, 0
      %v729 = vsel %vm664, %v554, 0
      %v732 = vsel %vm664, %v556, 0
      %v735 = vsel %vm664, %v558, 0
      %v738 = vsel %vm664, %v560, 0
      %v741 = vsel %vm664, %v562, 0
      %v744 = vsel %vm664, %v564, 0
      %v747 = vsel %vm664, %v566, 0
      %v750 = vsel %vm664, %v568, 0
      %v753 = vsel %vm664, %v570, 0
      %v756 = vsel %vm664, %v572, 0
      %v759 = vsel %vm664, %v574, 0
      %vm761 = vcmask 1040384
      %vm762 = vcmask 1041408
      %v763 = vsel %vm761, 4294967295, 65535
      %v764 = vsel %vm762, %v763, 0
      %v766 = vand.u32 %v654, %v764
      %768 = vmatprep.subr.bf16.mxu0 0
      %769 = vmatpush1.bf16.msra.mxu0 %v645
      %770 = vmatprep.subr.bf16.mxu0 0
      %771 = vmatpush1.bf16.msra.mxu0 %v646
      %772 = vmatprep.subr.bf16.mxu0 0
      %773 = vmatpush1.bf16.msra.mxu0 %v647
      %774 = vmatprep.subr.bf16.mxu0 0
      %775 = vmatpush1.bf16.msra.mxu0 %v648
      %776 = vmatprep.subr.bf16.mxu0 0
      %777 = vmatpush1.bf16.msra.mxu0 %v649
      %778 = vmatprep.subr.bf16.mxu0 0
      %779 = vmatpush1.bf16.msra.mxu0 %v650
      %780 = vmatprep.subr.bf16.mxu0 0
      %781 = vmatpush1.bf16.msra.mxu0 %v651
      %782 = vmatprep.subr.bf16.mxu0 0
      %783 = vmatpush1.bf16.msra.mxu0 %v652
      %784 = vmatprep.subr.bf16.mxu0 0
      %785 = vmatpush1.bf16.msra.mxu0 %v653
      %786 = vmatprep.subr.bf16.mxu0 0
      %787 = vmatpush1.bf16.msra.mxu0 %v766
      %788 = vmatprep.subr.bf16.mxu0 0
      %789 = vmatpush1.bf16.msra.mxu0 0
      %790 = vmatprep.subr.bf16.mxu0 0
      %791 = vmatpush1.bf16.msra.mxu0 0
      %792 = vmatprep.subr.bf16.mxu0 0
      %793 = vmatpush1.bf16.msra.mxu0 0
      %794 = vmatprep.subr.bf16.mxu0 0
      %795 = vmatpush1.bf16.msra.mxu0 0
      %796 = vmatprep.subr.bf16.mxu0 0
      %797 = vmatpush1.bf16.msra.mxu0 0
      %798 = vmatprep.subr.bf16.mxu0 0
      %799 = vmatpush1.bf16.msra.mxu0 0
      %800 = vmatprep.mubr.bf16.mxu0 %v666
      %801 = vmatmul.mubr.bf16.gmra.mrb[0].mxu0 %v511
      %v802 = vpop.f32.mrb[0].mxu0
      %v803 = vadd.f32 %v317, %v802
      %v804 = vpop.f32.mrb[0].mxu0
      %v805 = vpop.f32.mrb[0].mxu0
      %v806 = vadd.f32 %v317, %v805
      %v807 = vpop.f32.mrb[0].mxu0
      %808 = vmatprep.mubr.bf16.mxu0 %v669
      %809 = vmatmul.mubr.bf16.gmra.mrb[0].mxu0 %v513
      %v810 = vpop.f32.mrb[0].mxu0
      %v811 = vadd.f32 %v317, %v810
      %v812 = vpop.f32.mrb[0].mxu0
      %v813 = vpop.f32.mrb[0].mxu0
      %v814 = vadd.f32 %v317, %v813
      %v815 = vpop.f32.mrb[0].mxu0
      %816 = vmatprep.mubr.bf16.mxu0 %v672
      %817 = vmatmul.mubr.bf16.gmra.mrb[0].mxu0 %v515
      %v818 = vpop.f32.mrb[0].mxu0
      %v819 = vadd.f32 %v317, %v818
      %v820 = vpop.f32.mrb[0].mxu0
      %v821 = vpop.f32.mrb[0].mxu0
      %v822 = vadd.f32 %v317, %v821
      %v823 = vpop.f32.mrb[0].mxu0
      %824 = vmatprep.mubr.bf16.mxu0 %v675
      %825 = vmatmul.mubr.bf16.gmra.mrb[0].mxu0 %v517
      %v826 = vpop.f32.mrb[0].mxu0
      %v827 = vadd.f32 %v317, %v826
      %v828 = vpop.f32.mrb[0].mxu0
      %v829 = vpop.f32.mrb[0].mxu0
      %v830 = vadd.f32 %v317, %v829
      %v831 = vpop.f32.mrb[0].mxu0
      %832 = vmatprep.mubr.bf16.mxu0 %v678
      %833 = vmatmul.mubr.bf16.gmra.mrb[0].mxu0 %v519
      %v834 = vpop.f32.mrb[0].mxu0
      %v835 = vadd.f32 %v317, %v834
      %v836 = vpop.f32.mrb[0].mxu0
      %v837 = vpop.f32.mrb[0].mxu0
      %v838 = vadd.f32 %v317, %v837
      %v839 = vpop.f32.mrb[0].mxu0
      %840 = vmatprep.mubr.bf16.mxu0 %v681
      %841 = vmatmul.mubr.bf16.gmra.mrb[0].mxu0 %v521
      %v842 = vpop.f32.mrb[0].mxu0
      %v843 = vadd.f32 %v317, %v842
      %v844 = vpop.f32.mrb[0].mxu0
      %v845 = vpop.f32.mrb[0].mxu0
      %v846 = vadd.f32 %v317, %v845
      %v847 = vpop.f32.mrb[0].mxu0
      %848 = vmatprep.mubr.bf16.mxu0 %v684
      %849 = vmatmul.mubr.bf16.gmra.mrb[0].mxu0 %v523
      %v850 = vpop.f32.mrb[0].mxu0
      %v851 = vadd.f32 %v317, %v850
      %v852 = vpop.f32.mrb[0].mxu0
      %v853 = vpop.f32.mrb[0].mxu0
      %v854 = vadd.f32 %v317, %v853
      %v855 = vpop.f32.mrb[0].mxu0
      %856 = vmatprep.mubr.bf16.mxu0 %v687
      %857 = vmatmul.mubr.bf16.gmra.mrb[0].mxu0 %v525
      %v858 = vpop.f32.mrb[0].mxu0
      %v859 = vadd.f32 %v317, %v858
      %v860 = vpop.f32.mrb[0].mxu0
      %v861 = vpop.f32.mrb[0].mxu0
      %v862 = vadd.f32 %v317, %v861
      %v863 = vpop.f32.mrb[0].mxu0
      %864 = vmatprep.mubr.bf16.mxu0 %v690
      %865 = vmatmul.mubr.bf16.gmra.mrb[0].mxu0 %v527
      %v866 = vpop.f32.mrb[0].mxu0
      %v867 = vadd.f32 %v317, %v866
      %v868 = vpop.f32.mrb[0].mxu0
      %v869 = vpop.f32.mrb[0].mxu0
      %v870 = vadd.f32 %v317, %v869
      %v871 = vpop.f32.mrb[0].mxu0
      %872 = vmatprep.mubr.bf16.mxu0 %v693
      %873 = vmatmul.mubr.bf16.gmra.mrb[0].mxu0 %v529
      %v874 = vpop.f32.mrb[0].mxu0
      %v875 = vadd.f32 %v317, %v874
      %v876 = vpop.f32.mrb[0].mxu0
      %v877 = vpop.f32.mrb[0].mxu0
      %v878 = vadd.f32 %v317, %v877
      %v879 = vpop.f32.mrb[0].mxu0
      %880 = vmatprep.mubr.bf16.mxu0 %v696
      %881 = vmatmul.mubr.bf16.gmra.mrb[0].mxu0 %v531
      %v882 = vpop.f32.mrb[0].mxu0
      %v883 = vadd.f32 %v317, %v882
      %v884 = vpop.f32.mrb[0].mxu0
      %v885 = vpop.f32.mrb[0].mxu0
      %v886 = vadd.f32 %v317, %v885
      %v887 = vpop.f32.mrb[0].mxu0
      %888 = vmatprep.mubr.bf16.mxu0 %v699
      %889 = vmatmul.mubr.bf16.gmra.mrb[0].mxu0 %v533
      %v890 = vpop.f32.mrb[0].mxu0
      %v891 = vadd.f32 %v317, %v890
      %v892 = vpop.f32.mrb[0].mxu0
      %v893 = vpop.f32.mrb[0].mxu0
      %v894 = vadd.f32 %v317, %v893
      %v895 = vpop.f32.mrb[0].mxu0
      %896 = vmatprep.mubr.bf16.mxu0 %v702
      %897 = vmatmul.mubr.bf16.gmra.mrb[0].mxu0 %v535
      %v898 = vpop.f32.mrb[0].mxu0
      %v899 = vadd.f32 %v317, %v898
      %v900 = vpop.f32.mrb[0].mxu0
      %v901 = vpop.f32.mrb[0].mxu0
      %v902 = vadd.f32 %v317, %v901
      %v903 = vpop.f32.mrb[0].mxu0
      %904 = vmatprep.mubr.bf16.mxu0 %v705
      %905 = vmatmul.mubr.bf16.gmra.mrb[0].mxu0 %v537
      %v906 = vpop.f32.mrb[0].mxu0
      %v907 = vadd.f32 %v317, %v906
      %v908 = vpop.f32.mrb[0].mxu0
      %v909 = vpop.f32.mrb[0].mxu0
      %v910 = vadd.f32 %v317, %v909
      %v911 = vpop.f32.mrb[0].mxu0
      %912 = vmatprep.mubr.bf16.mxu0 %v708
      %913 = vmatmul.mubr.bf16.gmra.mrb[0].mxu0 %v539
      %v914 = vpop.f32.mrb[0].mxu0
      %v915 = vadd.f32 %v317, %v914
      %v916 = vpop.f32.mrb[0].mxu0
      %v917 = vpop.f32.mrb[0].mxu0
      %v918 = vadd.f32 %v317, %v917
      %v919 = vpop.f32.mrb[0].mxu0
      %920 = vmatprep.mubr.bf16.mxu0 %v711
      %921 = vmatmul.mubr.bf16.gmra.mrb[0].mxu0 %v541
      %v922 = vpop.f32.mrb[0].mxu0
      %v923 = vadd.f32 %v317, %v922
      %v924 = vpop.f32.mrb[0].mxu0
      %v925 = vpop.f32.mrb[0].mxu0
      %v926 = vadd.f32 %v317, %v925
      %v927 = vpop.f32.mrb[0].mxu0
      %928 = vmatprep.mubr.bf16.mxu0 %v714
      %929 = vmatmul.mubr.bf16.gmra.mrb[0].mxu0 %v543
      %v930 = vpop.f32.mrb[0].mxu0
      %v931 = vadd.f32 %v317, %v930
      %v932 = vpop.f32.mrb[0].mxu0
      %v933 = vpop.f32.mrb[0].mxu0
      %v934 = vadd.f32 %v317, %v933
      %v935 = vpop.f32.mrb[0].mxu0
      %936 = vmatprep.mubr.bf16.mxu0 %v717
      %937 = vmatmul.mubr.bf16.gmra.mrb[0].mxu0 %v545
      %v938 = vpop.f32.mrb[0].mxu0
      %v939 = vadd.f32 %v317, %v938
      %v940 = vpop.f32.mrb[0].mxu0
      %v941 = vpop.f32.mrb[0].mxu0
      %v942 = vadd.f32 %v317, %v941
      %v943 = vpop.f32.mrb[0].mxu0
      %944 = vmatprep.mubr.bf16.mxu0 %v720
      %945 = vmatmul.mubr.bf16.gmra.mrb[0].mxu0 %v547
      %v946 = vpop.f32.mrb[0].mxu0
      %v947 = vadd.f32 %v317, %v946
      %v948 = vpop.f32.mrb[0].mxu0
      %v949 = vpop.f32.mrb[0].mxu0
      %v950 = vadd.f32 %v317, %v949
      %v951 = vpop.f32.mrb[0].mxu0
      %952 = vmatprep.mubr.bf16.mxu0 %v723
      %953 = vmatmul.mubr.bf16.gmra.mrb[0].mxu0 %v549
      %v954 = vpop.f32.mrb[0].mxu0
      %v955 = vadd.f32 %v317, %v954
      %v956 = vpop.f32.mrb[0].mxu0
      %v957 = vpop.f32.mrb[0].mxu0
      %v958 = vadd.f32 %v317, %v957
      %v959 = vpop.f32.mrb[0].mxu0
      %960 = vmatprep.mubr.bf16.mxu0 %v726
      %961 = vmatmul.mubr.bf16.gmra.mrb[0].mxu0 %v551
      %v962 = vpop.f32.mrb[0].mxu0
      %v963 = vadd.f32 %v317, %v962
      %v964 = vpop.f32.mrb[0].mxu0
      %v965 = vpop.f32.mrb[0].mxu0
      %v966 = vadd.f32 %v317, %v965
      %v967 = vpop.f32.mrb[0].mxu0
      %968 = vmatprep.mubr.bf16.mxu0 %v729
      %969 = vmatmul.mubr.bf16.gmra.mrb[0].mxu0 %v553
      %v970 = vpop.f32.mrb[0].mxu0
      %v971 = vadd.f32 %v317, %v970
      %v972 = vpop.f32.mrb[0].mxu0
      %v973 = vpop.f32.mrb[0].mxu0
      %v974 = vadd.f32 %v317, %v973
      %v975 = vpop.f32.mrb[0].mxu0
      %976 = vmatprep.mubr.bf16.mxu0 %v732
      %977 = vmatmul.mubr.bf16.gmra.mrb[0].mxu0 %v555
      %v978 = vpop.f32.mrb[0].mxu0
      %v979 = vadd.f32 %v317, %v978
      %v980 = vpop.f32.mrb[0].mxu0
      %v981 = vpop.f32.mrb[0].mxu0
      %v982 = vadd.f32 %v317, %v981
      %v983 = vpop.f32.mrb[0].mxu0
      %984 = vmatprep.mubr.bf16.mxu0 %v735
      %985 = vmatmul.mubr.bf16.gmra.mrb[0].mxu0 %v557
      %v986 = vpop.f32.mrb[0].mxu0
      %v987 = vadd.f32 %v317, %v986
      %v988 = vpop.f32.mrb[0].mxu0
      %v989 = vpop.f32.mrb[0].mxu0
      %v990 = vadd.f32 %v317, %v989
      %v991 = vpop.f32.mrb[0].mxu0
      %992 = vmatprep.mubr.bf16.mxu0 %v738
      %993 = vmatmul.mubr.bf16.gmra.mrb[0].mxu0 %v559
      %v994 = vpop.f32.mrb[0].mxu0
      %v995 = vadd.f32 %v317, %v994
      %v996 = vpop.f32.mrb[0].mxu0
      %v997 = vpop.f32.mrb[0].mxu0
      %v998 = vadd.f32 %v317, %v997
      %v999 = vpop.f32.mrb[0].mxu0
      %1000 = vmatprep.mubr.bf16.mxu0 %v741
      %1001 = vmatmul.mubr.bf16.gmra.mrb[0].mxu0 %v561
      %v1002 = vpop.f32.mrb[0].mxu0
      %v1003 = vadd.f32 %v317, %v1002
      %v1004 = vpop.f32.mrb[0].mxu0
      %v1005 = vpop.f32.mrb[0].mxu0
      %v1006 = vadd.f32 %v317, %v1005
      %v1007 = vpop.f32.mrb[0].mxu0
      %1008 = vmatprep.mubr.bf16.mxu0 %v744
      %1009 = vmatmul.mubr.bf16.gmra.mrb[0].mxu0 %v563
      %v1010 = vpop.f32.mrb[0].mxu0
      %v1011 = vadd.f32 %v317, %v1010
      %v1012 = vpop.f32.mrb[0].mxu0
      %v1013 = vpop.f32.mrb[0].mxu0
      %v1014 = vadd.f32 %v317, %v1013
      %v1015 = vpop.f32.mrb[0].mxu0
      %1016 = vmatprep.mubr.bf16.mxu0 %v747
      %1017 = vmatmul.mubr.bf16.gmra.mrb[0].mxu0 %v565
      %v1018 = vpop.f32.mrb[0].mxu0
      %v1019 = vadd.f32 %v317, %v1018
      %v1020 = vpop.f32.mrb[0].mxu0
      %v1021 = vpop.f32.mrb[0].mxu0
      %v1022 = vadd.f32 %v317, %v1021
      %v1023 = vpop.f32.mrb[0].mxu0
      %1024 = vmatprep.mubr.bf16.mxu0 %v750
      %1025 = vmatmul.mubr.bf16.gmra.mrb[0].mxu0 %v567
      %v1026 = vpop.f32.mrb[0].mxu0
      %v1027 = vadd.f32 %v317, %v1026
      %v1028 = vpop.f32.mrb[0].mxu0
      %v1029 = vpop.f32.mrb[0].mxu0
      %v1030 = vadd.f32 %v317, %v1029
      %v1031 = vpop.f32.mrb[0].mxu0
      %1032 = vmatprep.mubr.bf16.mxu0 %v753
      %1033 = vmatmul.mubr.bf16.gmra.mrb[0].mxu0 %v569
      %v1034 = vpop.f32.mrb[0].mxu0
      %v1035 = vadd.f32 %v317, %v1034
      %v1036 = vpop.f32.mrb[0].mxu0
      %v1037 = vpop.f32.mrb[0].mxu0
      %v1038 = vadd.f32 %v317, %v1037
      %v1039 = vpop.f32.mrb[0].mxu0
      %1040 = vmatprep.mubr.bf16.mxu0 %v756
      %1041 = vmatmul.mubr.bf16.gmra.mrb[0].mxu0 %v571
      %v1042 = vpop.f32.mrb[0].mxu0
      %v1043 = vadd.f32 %v317, %v1042
      %v1044 = vpop.f32.mrb[0].mxu0
      %v1045 = vpop.f32.mrb[0].mxu0
      %v1046 = vadd.f32 %v317, %v1045
      %v1047 = vpop.f32.mrb[0].mxu0
      %1048 = vmatprep.mubr.bf16.mxu0 %v759
      %1049 = vmatmul.mubr.bf16.gmra.mrb[0].mxu0 %v573
      %v1050 = vpop.f32.mrb[0].mxu0
      %v1051 = vadd.f32 %v317, %v1050
      %v1052 = vpop.f32.mrb[0].mxu0
      %v1053 = vpop.f32.mrb[0].mxu0
      %v1054 = vadd.f32 %v317, %v1053
      %v1055 = vpop.f32.mrb[0].mxu0
      %1056 = vdwg.mxu0
      %v1057 = vpack.c.bf16 %v806, %v803
      %v1058 = vpack.c.bf16 %v814, %v811
      %v1059 = vpack.c.bf16 %v822, %v819
      %v1060 = vpack.c.bf16 %v830, %v827
      %v1061 = vpack.c.bf16 %v838, %v835
      %v1062 = vpack.c.bf16 %v846, %v843
      %v1063 = vpack.c.bf16 %v854, %v851
      %v1064 = vpack.c.bf16 %v862, %v859
      %v1065 = vpack.c.bf16 %v870, %v867
      %v1066 = vpack.c.bf16 %v878, %v875
      %v1067 = vpack.c.bf16 %v886, %v883
      %v1068 = vpack.c.bf16 %v894, %v891
      %v1069 = vpack.c.bf16 %v902, %v899
      %v1070 = vpack.c.bf16 %v910, %v907
      %v1071 = vpack.c.bf16 %v918, %v915
      %v1072 = vpack.c.bf16 %v926, %v923
      %v1073 = vpack.c.bf16 %v934, %v931
      %v1074 = vpack.c.bf16 %v942, %v939
      %v1075 = vpack.c.bf16 %v950, %v947
      %v1076 = vpack.c.bf16 %v958, %v955
      %v1077 = vpack.c.bf16 %v966, %v963
      %v1078 = vpack.c.bf16 %v974, %v971
      %v1079 = vpack.c.bf16 %v982, %v979
      %v1080 = vpack.c.bf16 %v990, %v987
      %v1081 = vpack.c.bf16 %v998, %v995
      %v1082 = vpack.c.bf16 %v1006, %v1003
      %v1083 = vpack.c.bf16 %v1014, %v1011
      %v1084 = vpack.c.bf16 %v1022, %v1019
      %v1085 = vpack.c.bf16 %v1030, %v1027
      %v1086 = vpack.c.bf16 %v1038, %v1035
      %v1087 = vpack.c.bf16 %v1046, %v1043
      %v1088 = vpack.c.bf16 %v1054, %v1051
      %v1121 = vunpack.c.l.b16 %v1057
      %v1122 = vunpack.c.h.b16 %v1057
      %v1123 = vunpack.c.l.b16 %v1058
      %v1124 = vunpack.c.h.b16 %v1058
      %v1125 = vunpack.c.l.b16 %v1059
      %v1126 = vunpack.c.h.b16 %v1059
      %v1127 = vunpack.c.l.b16 %v1060
      %v1128 = vunpack.c.h.b16 %v1060
      %v1129 = vunpack.c.l.b16 %v1061
      %v1130 = vunpack.c.h.b16 %v1061
      %v1131 = vunpack.c.l.b16 %v1062
      %v1132 = vunpack.c.h.b16 %v1062
      %v1133 = vunpack.c.l.b16 %v1063
      %v1134 = vunpack.c.h.b16 %v1063
      %v1135 = vunpack.c.l.b16 %v1064
      %v1136 = vunpack.c.h.b16 %v1064
      %v1137 = vunpack.c.l.b16 %v1065
      %v1138 = vunpack.c.h.b16 %v1065
      %v1139 = vunpack.c.l.b16 %v1066
      %v1140 = vunpack.c.h.b16 %v1066
      %v1141 = vunpack.c.l.b16 %v1067
      %v1142 = vunpack.c.h.b16 %v1067
      %v1143 = vunpack.c.l.b16 %v1068
      %v1144 = vunpack.c.h.b16 %v1068
      %v1145 = vunpack.c.l.b16 %v1069
      %v1146 = vunpack.c.h.b16 %v1069
      %v1147 = vunpack.c.l.b16 %v1070
      %v1148 = vunpack.c.h.b16 %v1070
      %v1149 = vunpack.c.l.b16 %v1071
      %v1150 = vunpack.c.h.b16 %v1071
      %v1151 = vunpack.c.l.b16 %v1072
      %v1152 = vunpack.c.h.b16 %v1072
      %v1153 = vunpack.c.l.b16 %v1073
      %v1154 = vunpack.c.h.b16 %v1073
      %v1155 = vunpack.c.l.b16 %v1074
      %v1156 = vunpack.c.h.b16 %v1074
      %v1157 = vunpack.c.l.b16 %v1075
      %v1158 = vunpack.c.h.b16 %v1075
      %v1159 = vunpack.c.l.b16 %v1076
      %v1160 = vunpack.c.h.b16 %v1076
      %v1161 = vunpack.c.l.b16 %v1077
      %v1162 = vunpack.c.h.b16 %v1077
      %v1163 = vunpack.c.l.b16 %v1078
      %v1164 = vunpack.c.h.b16 %v1078
      %v1165 = vunpack.c.l.b16 %v1079
      %v1166 = vunpack.c.h.b16 %v1079
      %v1167 = vunpack.c.l.b16 %v1080
      %v1168 = vunpack.c.h.b16 %v1080
      %v1169 = vunpack.c.l.b16 %v1081
      %v1170 = vunpack.c.h.b16 %v1081
      %v1171 = vunpack.c.l.b16 %v1082
      %v1172 = vunpack.c.h.b16 %v1082
      %v1173 = vunpack.c.l.b16 %v1083
      %v1174 = vunpack.c.h.b16 %v1083
      %v1175 = vunpack.c.l.b16 %v1084
      %v1176 = vunpack.c.h.b16 %v1084
      %v1177 = vunpack.c.l.b16 %v1085
      %v1178 = vunpack.c.h.b16 %v1085
      %v1179 = vunpack.c.l.b16 %v1086
      %v1180 = vunpack.c.h.b16 %v1086
      %v1181 = vunpack.c.l.b16 %v1087
      %v1182 = vunpack.c.h.b16 %v1087
      %v1183 = vunpack.c.l.b16 %v1088
      %v1184 = vunpack.c.h.b16 %v1088
      %v1185 = vpack.c.b16 %v1121, %v1121
      %v1186 = vpack.c.b16 %v1122, %v1122
      %v1187 = vpack.c.b16 %v1123, %v1123
      %v1188 = vpack.c.b16 %v1124, %v1124
      %v1189 = vpack.c.b16 %v1125, %v1125
      %v1190 = vpack.c.b16 %v1126, %v1126
      %v1191 = vpack.c.b16 %v1127, %v1127
      %v1192 = vpack.c.b16 %v1128, %v1128
      %v1193 = vpack.c.b16 %v1129, %v1129
      %v1194 = vpack.c.b16 %v1130, %v1130
      %v1195 = vpack.c.b16 %v1131, %v1131
      %v1196 = vpack.c.b16 %v1132, %v1132
      %v1197 = vpack.c.b16 %v1133, %v1133
      %v1198 = vpack.c.b16 %v1134, %v1134
      %v1199 = vpack.c.b16 %v1135, %v1135
      %v1200 = vpack.c.b16 %v1136, %v1136
      %v1201 = vpack.c.b16 %v1137, %v1137
      %v1202 = vpack.c.b16 %v1138, %v1138
      %v1203 = vpack.c.b16 %v1139, %v1139
      %v1204 = vpack.c.b16 %v1140, %v1140
      %v1205 = vpack.c.b16 %v1141, %v1141
      %v1206 = vpack.c.b16 %v1142, %v1142
      %v1207 = vpack.c.b16 %v1143, %v1143
      %v1208 = vpack.c.b16 %v1144, %v1144
      %v1209 = vpack.c.b16 %v1145, %v1145
      %v1210 = vpack.c.b16 %v1146, %v1146
      %v1211 = vpack.c.b16 %v1147, %v1147
      %v1212 = vpack.c.b16 %v1148, %v1148
      %v1213 = vpack.c.b16 %v1149, %v1149
      %v1214 = vpack.c.b16 %v1150, %v1150
      %v1215 = vpack.c.b16 %v1151, %v1151
      %v1216 = vpack.c.b16 %v1152, %v1152
      %v1217 = vpack.c.b16 %v1153, %v1153
      %v1218 = vpack.c.b16 %v1154, %v1154
      %v1219 = vpack.c.b16 %v1155, %v1155
      %v1220 = vpack.c.b16 %v1156, %v1156
      %v1221 = vpack.c.b16 %v1157, %v1157
      %v1222 = vpack.c.b16 %v1158, %v1158
      %v1223 = vpack.c.b16 %v1159, %v1159
      %v1224 = vpack.c.b16 %v1160, %v1160
      %v1225 = vpack.c.b16 %v1161, %v1161
      %v1226 = vpack.c.b16 %v1162, %v1162
      %v1227 = vpack.c.b16 %v1163, %v1163
      %v1228 = vpack.c.b16 %v1164, %v1164
      %v1229 = vpack.c.b16 %v1165, %v1165
      %v1230 = vpack.c.b16 %v1166, %v1166
      %v1231 = vpack.c.b16 %v1167, %v1167
      %v1232 = vpack.c.b16 %v1168, %v1168
      %v1233 = vpack.c.b16 %v1169, %v1169
      %v1234 = vpack.c.b16 %v1170, %v1170
      %v1235 = vpack.c.b16 %v1171, %v1171
      %v1236 = vpack.c.b16 %v1172, %v1172
      %v1237 = vpack.c.b16 %v1173, %v1173
      %v1238 = vpack.c.b16 %v1174, %v1174
      %v1239 = vpack.c.b16 %v1175, %v1175
      %v1240 = vpack.c.b16 %v1176, %v1176
      %v1241 = vpack.c.b16 %v1177, %v1177
      %v1242 = vpack.c.b16 %v1178, %v1178
      %v1243 = vpack.c.b16 %v1179, %v1179
      %v1244 = vpack.c.b16 %v1180, %v1180
      %v1245 = vpack.c.b16 %v1181, %v1181
      %v1246 = vpack.c.b16 %v1182, %v1182
      %v1247 = vpack.c.b16 %v1183, %v1183
      %v1248 = vpack.c.b16 %v1184, %v1184
      %vm1313 = vcmask 519168
      %1314 = vst.msk [vmem:[%s226] sm:$0xf] %vm1313, %v1185
      %1315 = vst.msk [vmem:[%s226 + $0x4] sm:$0xf] %vm1313, %v1186
      %1316 = vst.msk [vmem:[%s226 + $0x8] sm:$0xf] %vm1313, %v1187
      %1317 = vst.msk [vmem:[%s226 + $0xc] sm:$0xf] %vm1313, %v1188
      %1318 = vst.msk [vmem:[%s226 + $0x10] sm:$0xf] %vm1313, %v1189
      %1319 = vst.msk [vmem:[%s226 + $0x14] sm:$0xf] %vm1313, %v1190
      %1320 = vst.msk [vmem:[%s226 + $0x18] sm:$0xf] %vm1313, %v1191
      %1321 = vst.msk [vmem:[%s226 + $0x1c] sm:$0xf] %vm1313, %v1192
      %1322 = vst.msk [vmem:[%s226 + $0x20] sm:$0xf] %vm1313, %v1193
      %1323 = vst.msk [vmem:[%s226 + $0x24] sm:$0xf] %vm1313, %v1194
      %1324 = vst.msk [vmem:[%s226 + $0x28] sm:$0xf] %vm1313, %v1195
      %1325 = vst.msk [vmem:[%s226 + $0x2c] sm:$0xf] %vm1313, %v1196
      %1326 = vst.msk [vmem:[%s226 + $0x30] sm:$0xf] %vm1313, %v1197
      %1327 = vst.msk [vmem:[%s226 + $0x34] sm:$0xf] %vm1313, %v1198
      %1328 = vst.msk [vmem:[%s226 + $0x38] sm:$0xf] %vm1313, %v1199
      %1329 = vst.msk [vmem:[%s226 + $0x3c] sm:$0xf] %vm1313, %v1200
      %1330 = vst.msk [vmem:[%s226 + $0x40] sm:$0xf] %vm1313, %v1201
      %1331 = vst.msk [vmem:[%s226 + $0x44] sm:$0xf] %vm1313, %v1202
      %1332 = vst.msk [vmem:[%s226 + $0x48] sm:$0xf] %vm1313, %v1203
      %1333 = vst.msk [vmem:[%s226 + $0x4c] sm:$0xf] %vm1313, %v1204
      %1334 = vst.msk [vmem:[%s226 + $0x50] sm:$0xf] %vm1313, %v1205
      %1335 = vst.msk [vmem:[%s226 + $0x54] sm:$0xf] %vm1313, %v1206
      %1336 = vst.msk [vmem:[%s226 + $0x58] sm:$0xf] %vm1313, %v1207
      %1337 = vst.msk [vmem:[%s226 + $0x5c] sm:$0xf] %vm1313, %v1208
      %1338 = vst.msk [vmem:[%s226 + $0x60] sm:$0xf] %vm1313, %v1209
      %1339 = vst.msk [vmem:[%s226 + $0x64] sm:$0xf] %vm1313, %v1210
      %1340 = vst.msk [vmem:[%s226 + $0x68] sm:$0xf] %vm1313, %v1211
      %1341 = vst.msk [vmem:[%s226 + $0x6c] sm:$0xf] %vm1313, %v1212
      %1342 = vst.msk [vmem:[%s226 + $0x70] sm:$0xf] %vm1313, %v1213
      %1343 = vst.msk [vmem:[%s226 + $0x74] sm:$0xf] %vm1313, %v1214
      %1344 = vst.msk [vmem:[%s226 + $0x78] sm:$0xf] %vm1313, %v1215
      %1345 = vst.msk [vmem:[%s226 + $0x7c] sm:$0xf] %vm1313, %v1216
      %1346 = vst.msk [vmem:[%s226 + $0x80] sm:$0xf] %vm1313, %v1217
      %1347 = vst.msk [vmem:[%s226 + $0x84] sm:$0xf] %vm1313, %v1218
      %1348 = vst.msk [vmem:[%s226 + $0x88] sm:$0xf] %vm1313, %v1219
      %1349 = vst.msk [vmem:[%s226 + $0x8c] sm:$0xf] %vm1313, %v1220
      %1350 = vst.msk [vmem:[%s226 + $0x90] sm:$0xf] %vm1313, %v1221
      %1351 = vst.msk [vmem:[%s226 + $0x94] sm:$0xf] %vm1313, %v1222
      %1352 = vst.msk [vmem:[%s226 + $0x98] sm:$0xf] %vm1313, %v1223
      %1353 = vst.msk [vmem:[%s226 + $0x9c] sm:$0xf] %vm1313, %v1224
      %1354 = vst.msk [vmem:[%s226 + $0xa0] sm:$0xf] %vm1313, %v1225
      %1355 = vst.msk [vmem:[%s226 + $0xa4] sm:$0xf] %vm1313, %v1226
      %1356 = vst.msk [vmem:[%s226 + $0xa8] sm:$0xf] %vm1313, %v1227
      %1357 = vst.msk [vmem:[%s226 + $0xac] sm:$0xf] %vm1313, %v1228
      %1358 = vst.msk [vmem:[%s226 + $0xb0] sm:$0xf] %vm1313, %v1229
      %1359 = vst.msk [vmem:[%s226 + $0xb4] sm:$0xf] %vm1313, %v1230
      %1360 = vst.msk [vmem:[%s226 + $0xb8] sm:$0xf] %vm1313, %v1231
      %1361 = vst.msk [vmem:[%s226 + $0xbc] sm:$0xf] %vm1313, %v1232
      %1362 = vst.msk [vmem:[%s226 + $0xc0] sm:$0xf] %vm1313, %v1233
      %1363 = vst.msk [vmem:[%s226 + $0xc4] sm:$0xf] %vm1313, %v1234
      %1364 = vst.msk [vmem:[%s226 + $0xc8] sm:$0xf] %vm1313, %v1235
      %1365 = vst.msk [vmem:[%s226 + $0xcc] sm:$0xf] %vm1313, %v1236
      %1366 = vst.msk [vmem:[%s226 + $0xd0] sm:$0xf] %vm1313, %v1237
      %1367 = vst.msk [vmem:[%s226 + $0xd4] sm:$0xf] %vm1313, %v1238
      %1368 = vst.msk [vmem:[%s226 + $0xd8] sm:$0xf] %vm1313, %v1239
      %1369 = vst.msk [vmem:[%s226 + $0xdc] sm:$0xf] %vm1313, %v1240
      %1370 = vst.msk [vmem:[%s226 + $0xe0] sm:$0xf] %vm1313, %v1241
      %1371 = vst.msk [vmem:[%s226 + $0xe4] sm:$0xf] %vm1313, %v1242
      %1372 = vst.msk [vmem:[%s226 + $0xe8] sm:$0xf] %vm1313, %v1243
      %1373 = vst.msk [vmem:[%s226 + $0xec] sm:$0xf] %vm1313, %v1244
      %1374 = vst.msk [vmem:[%s226 + $0xf0] sm:$0xf] %vm1313, %v1245
      %1375 = vst.msk [vmem:[%s226 + $0xf4] sm:$0xf] %vm1313, %v1246
      %1376 = vst.msk [vmem:[%s226 + $0xf8] sm:$0xf] %vm1313, %v1247
      %1377 = vst.msk [vmem:[%s226 + $0xfc] sm:$0xf] %vm1313, %v1248
      %s1378 = smul.u32 64, %s18
      %p1379 = scmp.lt.s32.totalorder %s1378, 255
      %s1380 = scalar_select %p1379, %s1378, 255
      %p1381 = scmp.lt.s32.totalorder %s19, 0
      %s1382 = scalar_select %p1381, %s19, 0
      %s1383 = sadd.s32 %s1382, %s1380
      %s1384 = smul.addr %s1383, 4
      %s1385 = scalar_lea.vmem %s3, %s1384
      // Predicated region
      $region33: #{matmul_bias.1} parent=31 // pred_check
        %p1386 = pneg %p124
      $region34: #{matmul_bias.1} parent=31 // pred_check_branch
        %1388 = sbr.rel (%p1386) target = $region36
      $region35: #{matmul_bias.1} parent=31 // pred_region
        %s1389 = smul.u32 64, %s18
      $region36: #{matmul_bias.1} parent=31 // pred_fallthru
        _
    $region32: #{matmul_bias.1} parent=5 // pred_fallthru
      _
    %p1390 = scmp.le.s32.totalorder 2, %s9
    // Predicated region
    $region37: #{matmul_bias.1} parent=5 // pred_check
      %p1391 = pneg %p1390
    $region38: #{matmul_bias.1} parent=5 // pred_check_branch
      %1393 = sbr.rel (%p1391) target = $region40
    $region39: #{matmul_bias.1} parent=5 // pred_region
      %s1394 = ssub.s32 %s9, 2
      // Predicated region
      $region41: #{matmul_bias.1} parent=39 // pred_check
        %p1395 = pneg %p130
      $region42: #{matmul_bias.1} parent=39 // pred_check_branch
        %1397 = sbr.rel (%p1395) target = $region44
      $region43: #{matmul_bias.1} parent=39 // pred_region
        %s1398 = smul.u32 64, %s20
        %p1399 = scmp.lt.s32.totalorder %s1398, 255
        %s1400 = scalar_select %p1399, %s1398, 255
        %p1401 = scmp.lt.s32.totalorder %s21, 0
        %s1402 = scalar_select %p1401, %s21, 0
        %s1403 = sadd.s32 %s1402, %s1400
        %s1404 = smul.addr %s1403, 4
        %s1405 = scalar_lea.vmem %s3, %s1404
      $region44: #{matmul_bias.1} parent=39 // pred_fallthru
        _
    $region40: #{matmul_bias.1} parent=5 // pred_fallthru
      _
  $region6: #{matmul_bias.1} parent=0 // loop_footer
    %s13 = sadd.s32 1, %s9
  $region7: #{matmul_bias.1} parent=0 // loop_footer_branch
    %8 = sbr.rel target = $region3
  $region8: #{matmul_bias.1} parent=0 // loop_exit
    _

</llo_original>
